<compile_context>
chip_gen: v5e
topology: v5e:2x2
jax: 0.10.0
libtpu: 0.0.40
codegen_flags: <defaults>
</compile_context>

<pallas_src>
import functools

import jax
import jax.numpy as jnp
from jax.experimental import pallas as pl
from jax.experimental.pallas import tpu as pltpu

FEAT = 4                 # per-endpoint feature width
IN_F = 2 * FEAT          # 8 = concatenated feature width
HIDDEN = 32
PACK = 4                 # edges packed per lane-row (4 * 32 = 128 output lanes)
MAX_ROWS = 16384         # packed rows per grid step (= 65536 edges, ~20 MiB VMEM)
MIN_SPLIT_ROWS = 1024    # below this, a single block beats splitting for 2 TCs


def edge_encoder_kernel(src_ref, dst_ref, w1s_ref, w1d_ref, b1_ref,
                        w2_ref, b2_ref, out_ref):
    # src_ref/dst_ref: (rows, 16)  -- 4 edges x 4 features per row
    # w1s_ref/w1d_ref: (16, 128)   -- block-diagonal halves of W1 (4 copies)
    # w2_ref:          (128, 128)  -- block-diagonal W2 (4 copies)
    # b1_ref/b2_ref:   (1, 128)    -- biases tiled 4x
    h = jnp.dot(src_ref[...], w1s_ref[...], preferred_element_type=jnp.float32)
    h = h + jnp.dot(dst_ref[...], w1d_ref[...],
                    preferred_element_type=jnp.float32)
    h = jnp.maximum(h + b1_ref[...], 0.0)                      # VPU ReLU
    out = jnp.dot(h, w2_ref[...], preferred_element_type=jnp.float32)
    out_ref[...] = (out + b2_ref[...]).astype(out_ref.dtype)   # (rows, 128)


def _block_diag(w, n):
    """(k, m) -> (n*k, n*m) block diagonal with n copies of w. Exact."""
    k, m = w.shape
    eye = jnp.eye(n, dtype=w.dtype)
    return (eye[:, None, :, None] * w[None, :, None, :]).reshape(n * k, n * m)


def prepare_params(params):
    """One-time expansion of the tiny MLP weights into packed/block-diag form."""
    w1, b1, w2, b2 = params                 # (8,32), (1,32), (32,32), (1,32)
    w1 = w1.astype(jnp.float32)
    w2 = w2.astype(jnp.float32)
    w1s_big = _block_diag(w1[:FEAT, :], PACK)        # (16, 128) -- src half
    w1d_big = _block_diag(w1[FEAT:, :], PACK)        # (16, 128) -- dest half
    w2_big = _block_diag(w2, PACK)                   # (128, 128)
    b1_big = jnp.tile(b1.reshape(1, HIDDEN).astype(jnp.float32), (1, PACK))
    b2_big = jnp.tile(b2.reshape(1, HIDDEN).astype(jnp.float32), (1, PACK))
    return w1s_big, w1d_big, w2_big, b1_big, b2_big


def _round_up(x, m):
    return ((x + m - 1) // m) * m


def _choose_rows_tile(num_rows):
    """Pick packed-row tile: big enough to amortize per-step overhead, small
    enough to fit VMEM, and (when there is enough work) >= 2 grid steps so
    v7x's two TensorCores both get a share of the parallel axis."""
    if num_rows <= MIN_SPLIT_ROWS:
        return num_rows                                  # single full-extent block
    return min(MAX_ROWS, _round_up(pl.cdiv(num_rows, 2), 8))


@functools.partial(jax.jit, static_argnames=("out_dtype",))
def edge_encoder_forward(src, dest, edge_attr, u, batch, prepared,
                         out_dtype=jnp.float32):
    """Pallas implementation of EdgeEncoder.forward.

    edge_attr / u / batch are accepted (to match the PyTorch signature) but
    unused, exactly like the reference forward pass.
    """
    del edge_attr, u, batch
    w1s_big, w1d_big, w2_big, b1_big, b2_big = prepared
    E = src.shape[0]

    src = src.astype(jnp.float32)
    dest = dest.astype(jnp.float32)

    # Pad only up to a multiple of PACK (<= 3 rows); skipped when unnecessary.
    E_pad = _round_up(E, PACK)
    if E_pad != E:
        pad = ((0, E_pad - E), (0, 0))
        src = jnp.pad(src, pad)
        dest = jnp.pad(dest, pad)

    R = E_pad // PACK                                     # packed rows
    src_p = src.reshape(R, PACK * FEAT)                   # free row-major view
    dst_p = dest.reshape(R, PACK * FEAT)

    rows = _choose_rows_tile(R)
    grid = (pl.cdiv(R, rows),)                            # ragged last block OK

    out_packed = pl.pallas_call(
        edge_encoder_kernel,
        out_shape=jax.ShapeDtypeStruct((R, PACK * HIDDEN), out_dtype),
        grid_spec=pltpu.PrefetchScalarGridSpec(
            num_scalar_prefetch=0,
            grid=grid,
            in_specs=[
                pl.BlockSpec((rows, PACK * FEAT), lambda i: (i, 0)),   # src tile
                pl.BlockSpec((rows, PACK * FEAT), lambda i: (i, 0)),   # dest tile
                pl.BlockSpec((PACK * FEAT, PACK * HIDDEN), lambda i: (0, 0)),
                pl.BlockSpec((PACK * FEAT, PACK * HIDDEN), lambda i: (0, 0)),
                pl.BlockSpec((1, PACK * HIDDEN), lambda i: (0, 0)),
                pl.BlockSpec((PACK * HIDDEN, PACK * HIDDEN), lambda i: (0, 0)),
                pl.BlockSpec((1, PACK * HIDDEN), lambda i: (0, 0)),
            ],
            out_specs=pl.BlockSpec((rows, PACK * HIDDEN), lambda i: (i, 0)),
        ),
        compiler_params=pltpu.CompilerParams(
            dimension_semantics=("parallel",),
            vmem_limit_bytes=32 * 1024 * 1024,   # covers ~20 MiB peak on all gens
        ),
    )(src_p, dst_p, w1s_big, w1d_big, b1_big, w2_big, b2_big)

    out = out_packed.reshape(E_pad, HIDDEN)               # free view back
    return out if E_pad == E else out[:E]


def init_params(key):
    """Deterministic init matching nn.Linear default (U[-1/sqrt(fan_in), +])."""
    k1, k2, k3, k4 = jax.random.split(key, 4)
    bound1 = 1.0 / jnp.sqrt(float(IN_F))
    bound2 = 1.0 / jnp.sqrt(float(HIDDEN))
    w1 = jax.random.uniform(k1, (IN_F, HIDDEN), jnp.float32, -bound1, bound1)
    b1 = jax.random.uniform(k2, (1, HIDDEN), jnp.float32, -bound1, bound1)
    w2 = jax.random.uniform(k3, (HIDDEN, HIDDEN), jnp.float32, -bound2, bound2)
    b2 = jax.random.uniform(k4, (1, HIDDEN), jnp.float32, -bound2, bound2)
    return w1, b1, w2, b2


def reference_forward(src, dest, params):
    w1, b1, w2, b2 = params
    x = jnp.concatenate([src, dest], axis=1)
    h = jnp.maximum(
        jnp.dot(x, w1, precision=jax.lax.Precision.HIGHEST) + b1, 0.0)
    return jnp.dot(h, w2, precision=jax.lax.Precision.HIGHEST) + b2


if __name__ == "__main__":
    key = jax.random.PRNGKey(0)
    kp, ks, kd, ke, ku = jax.random.split(key, 5)

    params = init_params(kp)
    prepared = prepare_params(params)

    # Small shapes consistent with the module: E edges, 4 features each.
    E = 16
    src = jax.random.normal(ks, (E, FEAT), jnp.float32)
    dest = jax.random.normal(kd, (E, FEAT), jnp.float32)
    edge_attr = jax.random.normal(ke, (E, FEAT), jnp.float32)  # unused, per module
    u = jax.random.normal(ku, (2, FEAT), jnp.float32)          # unused, per module
    batch = jnp.zeros((E,), jnp.int32)                         # unused, per module

    out = edge_encoder_forward(src, dest, edge_attr, u, batch, prepared)
    out = jax.block_until_ready(out)
    ref = reference_forward(src, dest, params)
    assert out.shape == (E, HIDDEN)
    assert jnp.allclose(out, ref, atol=1e-4, rtol=1e-4), "mismatch vs reference"

    # Secondary check: E not a multiple of PACK (exercises the small pad/slice).
    E2 = 10
    src2, dest2 = src[:E2], dest[:E2]
    out2 = edge_encoder_forward(src2, dest2, edge_attr[:E2], u,
                                batch[:E2], prepared)
    out2 = jax.block_until_ready(out2)
    ref2 = reference_forward(src2, dest2, params)
    assert out2.shape == (E2, HIDDEN)
    assert jnp.allclose(out2, ref2, atol=1e-4, rtol=1e-4), "ragged mismatch"

    print("KERNEL_OK")
</pallas_src>

<mosaic_0001>
module attributes {stable_mosaic.version = 11 : i64} {
  func.func @edge_encoder_kernel(%arg0: i32, %arg1: memref<4x16xf32, #tpu.memory_space<vmem>>, %arg2: memref<4x16xf32, #tpu.memory_space<vmem>>, %arg3: memref<16x128xf32, #tpu.memory_space<vmem>>, %arg4: memref<16x128xf32, #tpu.memory_space<vmem>>, %arg5: memref<1x128xf32, #tpu.memory_space<vmem>>, %arg6: memref<128x128xf32, #tpu.memory_space<vmem>>, %arg7: memref<1x128xf32, #tpu.memory_space<vmem>>, %arg8: memref<4x128xf32, #tpu.memory_space<vmem>>) attributes {dimension_semantics = [#tpu.dimension_semantics<parallel>], iteration_bounds = array<i64: 1>, scalar_prefetch = 0 : i64, scratch_operands = 0 : i64, tpu.core_type = #tpu.core_type<tc>, window_params = [{transform_indices = @transform_0, window_bounds = array<i64: 4, 16>}, {transform_indices = @transform_1, window_bounds = array<i64: 4, 16>}, {pipeline_mode = #tpu.pipeline_mode<synchronous>, transform_indices = @transform_2, window_bounds = array<i64: 16, 128>}, {pipeline_mode = #tpu.pipeline_mode<synchronous>, transform_indices = @transform_3, window_bounds = array<i64: 16, 128>}, {pipeline_mode = #tpu.pipeline_mode<synchronous>, transform_indices = @transform_4, window_bounds = array<i64: 1, 128>}, {pipeline_mode = #tpu.pipeline_mode<synchronous>, transform_indices = @transform_5, window_bounds = array<i64: 128, 128>}, {pipeline_mode = #tpu.pipeline_mode<synchronous>, transform_indices = @transform_6, window_bounds = array<i64: 1, 128>}, {transform_indices = @transform_7, window_bounds = array<i64: 4, 128>}]} {
    %c0 = arith.constant 0 : index
    %c0_0 = arith.constant 0 : index
    %0 = vector.load %arg1[%c0, %c0_0] : memref<4x16xf32, #tpu.memory_space<vmem>>, vector<4x16xf32>
    %c0_1 = arith.constant 0 : index
    %c0_2 = arith.constant 0 : index
    %1 = vector.load %arg3[%c0_1, %c0_2] : memref<16x128xf32, #tpu.memory_space<vmem>>, vector<16x128xf32>
    %cst = arith.constant dense<0.000000e+00> : vector<4x128xf32>
    %2 = tpu.matmul %0, %1, %cst {dimension_numbers = #tpu.dot_dimension_numbers<[1], [0], [0], [1], [0, 0, 1, 1], [], []>} : vector<4x16xf32>, vector<16x128xf32>, vector<4x128xf32> -> vector<4x128xf32>
    %c0_3 = arith.constant 0 : index
    %c0_4 = arith.constant 0 : index
    %3 = vector.load %arg2[%c0_3, %c0_4] : memref<4x16xf32, #tpu.memory_space<vmem>>, vector<4x16xf32>
    %c0_5 = arith.constant 0 : index
    %c0_6 = arith.constant 0 : index
    %4 = vector.load %arg4[%c0_5, %c0_6] : memref<16x128xf32, #tpu.memory_space<vmem>>, vector<16x128xf32>
    %cst_7 = arith.constant dense<0.000000e+00> : vector<4x128xf32>
    %5 = tpu.matmul %3, %4, %cst_7 {dimension_numbers = #tpu.dot_dimension_numbers<[1], [0], [0], [1], [0, 0, 1, 1], [], []>} : vector<4x16xf32>, vector<16x128xf32>, vector<4x128xf32> -> vector<4x128xf32>
    %6 = arith.addf %2, %5 : vector<4x128xf32>
    %c0_8 = arith.constant 0 : index
    %c0_9 = arith.constant 0 : index
    %7 = vector.load %arg5[%c0_8, %c0_9] : memref<1x128xf32, #tpu.memory_space<vmem>>, vector<1x128xf32>
    %8 = vector.broadcast %7 : vector<1x128xf32> to vector<4x128xf32>
    %9 = arith.addf %6, %8 : vector<4x128xf32>
    %cst_10 = arith.constant 0.000000e+00 : f32
    %10 = vector.broadcast %cst_10 : f32 to vector<4x128xf32>
    %11 = arith.maximumf %9, %10 : vector<4x128xf32>
    %c0_11 = arith.constant 0 : index
    %c0_12 = arith.constant 0 : index
    %12 = vector.load %arg6[%c0_11, %c0_12] : memref<128x128xf32, #tpu.memory_space<vmem>>, vector<128x128xf32>
    %cst_13 = arith.constant dense<0.000000e+00> : vector<4x128xf32>
    %13 = tpu.matmul %11, %12, %cst_13 {dimension_numbers = #tpu.dot_dimension_numbers<[1], [0], [0], [1], [0, 0, 1, 1], [], []>} : vector<4x128xf32>, vector<128x128xf32>, vector<4x128xf32> -> vector<4x128xf32>
    %c0_14 = arith.constant 0 : index
    %c0_15 = arith.constant 0 : index
    %14 = vector.load %arg7[%c0_14, %c0_15] : memref<1x128xf32, #tpu.memory_space<vmem>>, vector<1x128xf32>
    %15 = vector.broadcast %14 : vector<1x128xf32> to vector<4x128xf32>
    %16 = arith.addf %13, %15 : vector<4x128xf32>
    %c0_16 = arith.constant 0 : index
    %c0_17 = arith.constant 0 : index
    %17 = vector.load %arg8[%c0_16, %c0_17] : memref<4x128xf32, #tpu.memory_space<vmem>>, vector<4x128xf32>
    tpu.vector_store %arg8[%c0_16, %c0_17], %16 {strides = array<i32>} : memref<4x128xf32, #tpu.memory_space<vmem>>, vector<4x128xf32>,
    return
  }
  func.func @transform_0(%arg0: i32) -> (i32, i32) {
    %c0_i32 = arith.constant 0 : i32
    %c0_i32_0 = arith.constant 0 : i32
    return %arg0, %c0_i32 : i32, i32
  }
  func.func @transform_1(%arg0: i32) -> (i32, i32) {
    %c0_i32 = arith.constant 0 : i32
    %c0_i32_0 = arith.constant 0 : i32
    return %arg0, %c0_i32 : i32, i32
  }
  func.func @transform_2(%arg0: i32) -> (i32, i32) {
    %c0_i32 = arith.constant 0 : i32
    %c0_i32_0 = arith.constant 0 : i32
    %c0_i32_1 = arith.constant 0 : i32
    return %c0_i32, %c0_i32_0 : i32, i32
  }
  func.func @transform_3(%arg0: i32) -> (i32, i32) {
    %c0_i32 = arith.constant 0 : i32
    %c0_i32_0 = arith.constant 0 : i32
    %c0_i32_1 = arith.constant 0 : i32
    return %c0_i32, %c0_i32_0 : i32, i32
  }
  func.func @transform_4(%arg0: i32) -> (i32, i32) {
    %c0_i32 = arith.constant 0 : i32
    %c0_i32_0 = arith.constant 0 : i32
    %c0_i32_1 = arith.constant 0 : i32
    return %c0_i32, %c0_i32_0 : i32, i32
  }
  func.func @transform_5(%arg0: i32) -> (i32, i32) {
    %c0_i32 = arith.constant 0 : i32
    %c0_i32_0 = arith.constant 0 : i32
    %c0_i32_1 = arith.constant 0 : i32
    return %c0_i32, %c0_i32_0 : i32, i32
  }
  func.func @transform_6(%arg0: i32) -> (i32, i32) {
    %c0_i32 = arith.constant 0 : i32
    %c0_i32_0 = arith.constant 0 : i32
    %c0_i32_1 = arith.constant 0 : i32
    return %c0_i32, %c0_i32_0 : i32, i32
  }
  func.func @transform_7(%arg0: i32) -> (i32, i32) {
    %c0_i32 = arith.constant 0 : i32
    %c0_i32_0 = arith.constant 0 : i32
    return %arg0, %c0_i32 : i32, i32
  }
}

</mosaic_0001>

<llo_original>
// kernel: edge_encoder_forward.1
$region0: #{edge_encoder_forward.1}
  #allocation0 [shape = 'u32[]', space=smem, size = 0x4, offset = 0x4, fixed_abs, tag = 'smem constant byte address 0x4 - core index']
  #allocation1 [shape = 'u32[72,128]{1,0:T(1,128)}', space=vmem, size = 0x9000, scoped, tag = 'internal scratch']
  %s0 = inlined_call_operand.vmem [shape: f32[4,16], index: 0, kind: input, shape index: {}]
  %s1 = inlined_call_operand.vmem [shape: f32[4,16], index: 1, kind: input, shape index: {}]
  %s2 = inlined_call_operand.vmem [shape: f32[16,128], index: 2, kind: input, shape index: {}]
  %s3 = inlined_call_operand.vmem [shape: f32[16,128], index: 3, kind: input, shape index: {}]
  %s4 = inlined_call_operand.vmem [shape: f32[1,128], index: 4, kind: input, shape index: {}]
  %s5 = inlined_call_operand.hbm [shape: f32[128,128], index: 5, kind: input, shape index: {}]
  %s6 = inlined_call_operand.vmem [shape: f32[1,128], index: 6, kind: input, shape index: {}]
  %s7 = inlined_call_operand.vmem [shape: f32[4,128], index: 7, kind: output, shape index: {}]
  %s8 = sld [smem:[#allocation0]]
  $region42: #{edge_encoder_forward.1} parent=0
    _
  %s10 = ssub.s32 1, %s8
  %s11 = scalar_select 0, %s10, %s8
  $region1: #{edge_encoder_forward.1} parent=0
    #allocation2 [shape = 'u8[65536]{0}', space=vmem, size = 0x10000, scoped, tag = 'input window, operand 5, single buffered']
    #allocation3 [shape = 's32[1]{0}', space=sflag, size = 0x4, scoped, tag = 'scoped memory for edge_encoder_forward.1']
    %12 = vsyncpa [#allocation3], 0
    // Predicated region
    $region2: #{edge_encoder_forward.1} parent=1 // pred_check
      _
    $region3: #{edge_encoder_forward.1} parent=1 // pred_check_branch
      %14 = sbr.rel (0) target = $region5
    $region4: #{edge_encoder_forward.1} parent=1 // pred_region
      _
    $region5: #{edge_encoder_forward.1} parent=1 // pred_fallthru
      _
    // Predicated region
    $region6: #{edge_encoder_forward.1} parent=1 // pred_check
      _
    $region7: #{edge_encoder_forward.1} parent=1 // pred_check_branch
      %16 = sbr.rel (0) target = $region9
    $region8: #{edge_encoder_forward.1} parent=1 // pred_region
      _
    $region9: #{edge_encoder_forward.1} parent=1 // pred_fallthru
      _
    // Predicated region
    $region10: #{edge_encoder_forward.1} parent=1 // pred_check
      _
    $region11: #{edge_encoder_forward.1} parent=1 // pred_check_branch
      %18 = sbr.rel (0) target = $region13
    $region12: #{edge_encoder_forward.1} parent=1 // pred_region
      _
    $region13: #{edge_encoder_forward.1} parent=1 // pred_fallthru
      _
    // Predicated region
    $region14: #{edge_encoder_forward.1} parent=1 // pred_check
      _
    $region15: #{edge_encoder_forward.1} parent=1 // pred_check_branch
      %20 = sbr.rel (0) target = $region17
    $region16: #{edge_encoder_forward.1} parent=1 // pred_region
      _
    $region17: #{edge_encoder_forward.1} parent=1 // pred_fallthru
      _
    // Predicated region
    $region18: #{edge_encoder_forward.1} parent=1 // pred_check
      _
    $region19: #{edge_encoder_forward.1} parent=1 // pred_check_branch
      %22 = sbr.rel (0) target = $region21
    $region20: #{edge_encoder_forward.1} parent=1 // pred_region
      _
    $region21: #{edge_encoder_forward.1} parent=1 // pred_fallthru
      _
    // Predicated region
    $region22: #{edge_encoder_forward.1} parent=1 // pred_check
      _
    $region23: #{edge_encoder_forward.1} parent=1 // pred_check_branch
      %24 = sbr.rel (0) target = $region25
    $region24: #{edge_encoder_forward.1} parent=1 // pred_region
      %26 = vsyncadd [#allocation3], 0
      %s27 = sshll.u32 %s5, 4
      %s28 = int_to_ptr.hbm [resolvable:$true] %s27
      %s29 = sshll.u32 [#allocation2], 4
      %s30 = int_to_ptr.vmem [resolvable:$true] %s29
      %35 = dma.hbm_to_vmem [thread:$0]  %s28, 2048, %s30, [#allocation3], 128, 128, 8
    $region25: #{edge_encoder_forward.1} parent=1 // pred_fallthru
      _
    // Predicated region
    $region26: #{edge_encoder_forward.1} parent=1 // pred_check
      _
    $region27: #{edge_encoder_forward.1} parent=1 // pred_check_branch
      %37 = sbr.rel (0) target = $region29
    $region28: #{edge_encoder_forward.1} parent=1 // pred_region
      _
    $region29: #{edge_encoder_forward.1} parent=1 // pred_fallthru
      _
    // Predicated region
    $region30: #{edge_encoder_forward.1} parent=1 // pred_check
      _
    $region31: #{edge_encoder_forward.1} parent=1 // pred_check_branch
      %39 = sbr.rel (0) target = $region33
    $region32: #{edge_encoder_forward.1} parent=1 // pred_region
      %41 = dma.done [#allocation3], 2048
    $region33: #{edge_encoder_forward.1} parent=1 // pred_fallthru
      _
    %v42 = vld [vmem:[%s0] sm:$0xf]
    %v43 = vld [vmem:[%s2] sm:$0xff]
    %v44 = vld [vmem:[%s2 + $0x8] sm:$0xff]
    %v45 = vld [vmem:[%s1] sm:$0xf]
    %v46 = vld [vmem:[%s3] sm:$0xff]
    %v47 = vld [vmem:[%s3 + $0x8] sm:$0xff]
    %vm48 = vcmask 130048
    %v50 = vsel %vm48, %v45, 0
    %52 = vmatpush.msra.mxu0 0.0
    %53 = vmatpush.msra.mxu0 0.0
    %54 = vmatpush.msra.mxu0 0.0
    %55 = vmatpush.msra.mxu0 0.0
    %56 = vmatpush.msra.mxu0 0.0
    %57 = vmatpush.msra.mxu0 0.0
    %58 = vmatpush.msra.mxu0 0.0
    %59 = vmatpush.msra.mxu0 0.0
    %60 = vmatpush.msra.mxu0 0.0
    %61 = vmatpush.msra.mxu0 0.0
    %62 = vmatpush.msra.mxu0 0.0
    %63 = vmatpush.msra.mxu0 0.0
    %64 = vmatpush.msra.mxu0 0.0
    %65 = vmatpush.msra.mxu0 0.0
    %66 = vmatpush.msra.mxu0 %v47
    %67 = vmatpush.msra.mxu0 %v46
    %68 = vmatmul.f32.gmra.mxu0 %v50
    %v69 = vpop.f32.mrf.mxu0
    %v70 = vadd.f32 0.0, %v69
    %71 = vdwg.mxu0
    %v73 = vsel %vm48, %v42, 0
    %75 = vmatpush.msra.mxu0 0.0
    %76 = vmatpush.msra.mxu0 0.0
    %77 = vmatpush.msra.mxu0 0.0
    %78 = vmatpush.msra.mxu0 0.0
    %79 = vmatpush.msra.mxu0 0.0
    %80 = vmatpush.msra.mxu0 0.0
    %81 = vmatpush.msra.mxu0 0.0
    %82 = vmatpush.msra.mxu0 0.0
    %83 = vmatpush.msra.mxu0 0.0
    %84 = vmatpush.msra.mxu0 0.0
    %85 = vmatpush.msra.mxu0 0.0
    %86 = vmatpush.msra.mxu0 0.0
    %87 = vmatpush.msra.mxu0 0.0
    %88 = vmatpush.msra.mxu0 0.0
    %89 = vmatpush.msra.mxu0 %v44
    %90 = vmatpush.msra.mxu0 %v43
    %91 = vmatmul.f32.gmra.mxu0 %v73
    %v92 = vpop.f32.mrf.mxu0
    %v93 = vadd.f32 %v70, %v92
    %94 = vdwg.mxu0
    %v95 = vld [vmem:[%s4] sm:$0x1]
    %v97 = vperm.slane %v95, 0
    %v99 = vadd.f32 %v93, %v97
    %v100 = vmax.f32 %v99, 0.0
    %v101 = vld [vmem:[#allocation2] sm:$0xff]
    %v102 = vld [vmem:[#allocation2 + $0x8] sm:$0xff]
    %v103 = vld [vmem:[#allocation2 + $0x10] sm:$0xff]
    %v104 = vld [vmem:[#allocation2 + $0x18] sm:$0xff]
    %v105 = vld [vmem:[#allocation2 + $0x20] sm:$0xff]
    %v106 = vld [vmem:[#allocation2 + $0x28] sm:$0xff]
    %v107 = vld [vmem:[#allocation2 + $0x30] sm:$0xff]
    %v108 = vld [vmem:[#allocation2 + $0x38] sm:$0xff]
    %v109 = vld [vmem:[#allocation2 + $0x40] sm:$0xff]
    %v110 = vld [vmem:[#allocation2 + $0x48] sm:$0xff]
    %v111 = vld [vmem:[#allocation2 + $0x50] sm:$0xff]
    %v112 = vld [vmem:[#allocation2 + $0x58] sm:$0xff]
    %v113 = vld [vmem:[#allocation2 + $0x60] sm:$0xff]
    %v114 = vld [vmem:[#allocation2 + $0x68] sm:$0xff]
    %v115 = vld [vmem:[#allocation2 + $0x70] sm:$0xff]
    %v116 = vld [vmem:[#allocation2 + $0x78] sm:$0xff]
    %v117 = vld [vmem:[%s6] sm:$0x1]
    %v119 = vperm.slane %v117, 0
    %121 = vmatpush.msra.mxu0 %v116
    %122 = vmatpush.msra.mxu0 %v115
    %123 = vmatpush.msra.mxu0 %v114
    %124 = vmatpush.msra.mxu0 %v113
    %125 = vmatpush.msra.mxu0 %v112
    %126 = vmatpush.msra.mxu0 %v111
    %127 = vmatpush.msra.mxu0 %v110
    %128 = vmatpush.msra.mxu0 %v109
    %129 = vmatpush.msra.mxu0 %v108
    %130 = vmatpush.msra.mxu0 %v107
    %131 = vmatpush.msra.mxu0 %v106
    %132 = vmatpush.msra.mxu0 %v105
    %133 = vmatpush.msra.mxu0 %v104
    %134 = vmatpush.msra.mxu0 %v103
    %135 = vmatpush.msra.mxu0 %v102
    %136 = vmatpush.msra.mxu0 %v101
    %137 = vmatmul.f32.gmra.mxu0 %v100
    %v138 = vpop.f32.mrf.mxu0
    %v139 = vadd.f32 %v119, %v138
    %140 = vdwg.mxu0
    %141 = vst [vmem:[%s7] sm:$0xf] %v139
    // Predicated region
    $region34: #{edge_encoder_forward.1} parent=1 // pred_check
      _
    $region35: #{edge_encoder_forward.1} parent=1 // pred_check_branch
      %143 = sbr.rel (0) target = $region37
    $region36: #{edge_encoder_forward.1} parent=1 // pred_region
      _
    $region37: #{edge_encoder_forward.1} parent=1 // pred_fallthru
      _
    // Predicated region
    $region38: #{edge_encoder_forward.1} parent=1 // pred_check
      _
    $region39: #{edge_encoder_forward.1} parent=1 // pred_check_branch
      %145 = sbr.rel (0) target = $region41
    $region40: #{edge_encoder_forward.1} parent=1 // pred_region
      _
    $region41: #{edge_encoder_forward.1} parent=1 // pred_fallthru
      _
    %146 = vsyncpa [#allocation3], 1

</llo_original>
